<compile_context>
chip_gen: v7x
topology: tpu7x:2x2x1
jax: 0.10.0
libtpu: 0.0.40
codegen_flags: <defaults>
</compile_context>

<pallas_src>
import numpy as np
import jax
import jax.numpy as jnp
from jax.experimental import pallas as pl
from jax.experimental.pallas import tpu as pltpu


ORDER = 8
CHANNELS = 3
GROUP = 16  # original rows packed per super-row -> K = GROUP*ORDER = 128 lanes


def _creat_hadmard(i: int, j: int) -> int:
    """Port of Hadmar.Creat_Hadmard: parity of 4-bit popcount of (i & j)."""
    temp = i & j
    result = 0
    for step in range(4):
        result += (temp >> step) & 1
    return 1 if result % 2 == 0 else -1


def build_hadmar_matrix(order: int = ORDER) -> np.ndarray:
    h = np.ones((order, order), dtype=np.int64)
    for i in range(order):
        for j in range(order):
            h[i][j] = _creat_hadmard(i, j)
    return h  # (order, order), values in {+1, -1}


def build_hadmar_stacked(order: int = ORDER, channels: int = CHANNELS) -> np.ndarray:
    h = build_hadmar_matrix(order)
    return np.stack([h] * channels, axis=2)  # (order, order, channels)


def build_blockdiag_hadmar(order: int = ORDER,
                           channels: int = CHANNELS,
                           group: int = GROUP) -> np.ndarray:
    """Block-diagonal (group*order, group*order*channels) f32 constant.

    bd[r*order + k, r*(order*channels) + j*channels + c] = H[k, j]
    so that a (Mg, 128) x (128, 384) matmul computes 16 independent rows of
    x @ H (replicated over channels) per super-row, lane-densely.
    """
    h = build_hadmar_matrix(order).astype(np.float32)      # (8, 8)
    h_flat = np.repeat(h, channels, axis=1)                # (8, 24): [k, j*3+c] = H[k, j]
    k_dim = group * order
    n_dim = group * order * channels
    nc = order * channels
    bd = np.zeros((k_dim, n_dim), dtype=np.float32)
    for r in range(group):
        bd[r * order:(r + 1) * order, r * nc:(r + 1) * nc] = h_flat
    return bd


# Compile-time constants, hoisted out of the forward wrapper.
_H_STACKED = jnp.asarray(build_hadmar_stacked(), dtype=jnp.float32)  # (8, 8, 3), reference
_H_BD = jnp.asarray(build_blockdiag_hadmar(), dtype=jnp.float32)     # (128, 384)


def _round_up(a: int, b: int) -> int:
    return ((a + b - 1) // b) * b


# ----------------------------- Pallas kernel ------------------------------ #

def hadmar_kernel(x_ref, h_ref, o_ref):
    # x_ref: (TM, 128), h_ref: (128, 384), o_ref: (TM, 384) -- all VMEM tiles.
    o_ref[...] = jnp.dot(
        x_ref[...], h_ref[...], preferred_element_type=jnp.float32
    ).astype(o_ref.dtype)


def hadmar_forward(x: jax.Array, tile_super_rows: int = 512) -> jax.Array:
    """x: (M, ORDER) float.  Returns (M, ORDER, CHANNELS) float32 with
    out[m, j, c] == (x @ H)[m, j] for every channel c."""
    M, K = x.shape
    assert K == ORDER, f"expected last dim {ORDER}, got {K}"

    x = x.astype(jnp.float32)

    # Pack GROUP rows per super-row; pad so the grid tiles evenly.
    mg = -(-M // GROUP)                                    # super-rows needed
    tm = min(_round_up(tile_super_rows, 8), _round_up(mg, 8))
    mg_pad = _round_up(mg, tm)
    m_pad = mg_pad * GROUP
    if m_pad != M:
        x = jnp.pad(x, ((0, m_pad - M), (0, 0)))

    x_g = x.reshape(mg_pad, GROUP * ORDER)                 # (Mg, 128)
    n_out = GROUP * ORDER * CHANNELS                       # 384 (lane-dense)
    grid = (mg_pad // tm,)

    out_g = pl.pallas_call(
        hadmar_kernel,
        out_shape=jax.ShapeDtypeStruct((mg_pad, n_out), jnp.float32),
        grid=grid,
        in_specs=[
            pl.BlockSpec((tm, GROUP * ORDER), lambda i: (i, 0)),
            pl.BlockSpec((GROUP * ORDER, n_out), lambda i: (0, 0)),  # constant tile
        ],
        out_specs=pl.BlockSpec((tm, n_out), lambda i: (i, 0)),
        compiler_params=pltpu.CompilerParams(
            dimension_semantics=("parallel",)),
    )(x_g, _H_BD)

    # NOTE: the 3x channel replication is materialized because the module's
    # forward returns (M, 8, 3); a consumer-fused variant could drop the two
    # redundant copies and save ~2x HBM write bandwidth.
    out = out_g.reshape(m_pad, ORDER * CHANNELS)[:M]
    return out.reshape(M, ORDER, CHANNELS)


# --------------------------------- main ----------------------------------- #

if __name__ == "__main__":
    key = jax.random.PRNGKey(0)

    # Small shape consistent with the module's `torch.randn(8, 8, ...)` usage.
    M = 8
    x = jax.random.normal(key, (M, ORDER), dtype=jnp.float32)

    out = jax.block_until_ready(hadmar_forward(x))
    assert out.shape == (M, ORDER, CHANNELS)
    ref = jnp.einsum("mk,kjc->mjc", x, _H_STACKED)
    np.testing.assert_allclose(np.asarray(out), np.asarray(ref), rtol=1e-5, atol=1e-5)

    # Second check: exercises row padding + a multi-step parallel grid.
    M2 = 600
    x2 = jax.random.normal(jax.random.PRNGKey(1), (M2, ORDER), dtype=jnp.float32)
    out2 = jax.block_until_ready(hadmar_forward(x2, tile_super_rows=16))
    ref2 = jnp.einsum("mk,kjc->mjc", x2, _H_STACKED)
    np.testing.assert_allclose(np.asarray(out2), np.asarray(ref2), rtol=1e-5, atol=1e-5)

    print("KERNEL_OK")
</pallas_src>

<mosaic_0001>
module attributes {stable_mosaic.version = 11 : i64} {
  func.func @hadmar_kernel(%arg0: i32, %arg1: memref<8x128xf32, #tpu.memory_space<vmem>>, %arg2: memref<128x384xf32, #tpu.memory_space<vmem>>, %arg3: memref<8x384xf32, #tpu.memory_space<vmem>>) attributes {dimension_semantics = [#tpu.dimension_semantics<parallel>], iteration_bounds = array<i64: 1>, scalar_prefetch = 0 : i64, scratch_operands = 0 : i64, tpu.core_type = #tpu.core_type<tc>, window_params = [{transform_indices = @transform_0, window_bounds = array<i64: 8, 128>}, {pipeline_mode = #tpu.pipeline_mode<synchronous>, transform_indices = @transform_1, window_bounds = array<i64: 128, 384>}, {transform_indices = @transform_2, window_bounds = array<i64: 8, 384>}]} {
    %c0 = arith.constant 0 : index
    %c0_0 = arith.constant 0 : index
    %0 = vector.load %arg1[%c0, %c0_0] : memref<8x128xf32, #tpu.memory_space<vmem>>, vector<8x128xf32>
    %c0_1 = arith.constant 0 : index
    %c0_2 = arith.constant 0 : index
    %1 = vector.load %arg2[%c0_1, %c0_2] : memref<128x384xf32, #tpu.memory_space<vmem>>, vector<128x384xf32>
    %cst = arith.constant dense<0.000000e+00> : vector<8x384xf32>
    %2 = tpu.matmul %0, %1, %cst {dimension_numbers = #tpu.dot_dimension_numbers<[1], [0], [0], [1], [0, 0, 1, 1], [], []>} : vector<8x128xf32>, vector<128x384xf32>, vector<8x384xf32> -> vector<8x384xf32>
    %c0_3 = arith.constant 0 : index
    %c0_4 = arith.constant 0 : index
    %3 = vector.load %arg3[%c0_3, %c0_4] : memref<8x384xf32, #tpu.memory_space<vmem>>, vector<8x384xf32>
    tpu.vector_store %arg3[%c0_3, %c0_4], %2 {strides = array<i32>} : memref<8x384xf32, #tpu.memory_space<vmem>>, vector<8x384xf32>,
    return
  }
  func.func @transform_0(%arg0: i32) -> (i32, i32) {
    %c0_i32 = arith.constant 0 : i32
    %c0_i32_0 = arith.constant 0 : i32
    return %arg0, %c0_i32 : i32, i32
  }
  func.func @transform_1(%arg0: i32) -> (i32, i32) {
    %c0_i32 = arith.constant 0 : i32
    %c0_i32_0 = arith.constant 0 : i32
    %c0_i32_1 = arith.constant 0 : i32
    return %c0_i32, %c0_i32_0 : i32, i32
  }
  func.func @transform_2(%arg0: i32) -> (i32, i32) {
    %c0_i32 = arith.constant 0 : i32
    %c0_i32_0 = arith.constant 0 : i32
    return %arg0, %c0_i32 : i32, i32
  }
}

</mosaic_0001>

<llo_original>
// kernel: tpu_custom_call.1
$region0: #{tpu_custom_call.1}
  #allocation0 [shape = 'u32[]', space=smem, size = 0x4, offset = 0x4, fixed_abs, tag = 'smem constant byte address 0x4 - core index']
  #allocation1 [shape = 'u32[144,128]{1,0:T(1,128)}', space=vmem, size = 0x12000, scoped, tag = 'internal scratch']
  %s0 = inlined_call_operand.hbm [shape: f32[8,128], index: 0, kind: input, shape index: {}]
  %s1 = inlined_call_operand.hbm [shape: f32[128,384], index: 1, kind: input, shape index: {}]
  %s2 = inlined_call_operand.hbm [shape: f32[8,384], index: 2, kind: output, shape index: {}]
  %s3 = sld [smem:[#allocation0]]
  $region26: #{tpu_custom_call.1} parent=0
    _
  %s5 = ssub.s32 1, %s3
  %s6 = scalar_select 0, %s5, %s3
  $region1: #{tpu_custom_call.1} parent=0
    #allocation2 [shape = 'u8[4096]{0}', space=vmem, size = 0x1000, scoped, tag = 'input window, operand 0, single buffered']
    #allocation3 [shape = 's32[1]{0}', space=sflag, size = 0x4, scoped, tag = 'scoped memory for tpu_custom_call.1']
    #allocation4 [shape = 's32[1]{0}', space=sflag, size = 0x4, scoped, tag = 'scoped memory for tpu_custom_call.1']
    #allocation5 [shape = 'u8[196608]{0}', space=vmem, size = 0x30000, scoped, tag = 'input window, operand 1, single buffered']
    #allocation6 [shape = 's32[1]{0}', space=sflag, size = 0x4, scoped, tag = 'scoped memory for tpu_custom_call.1']
    #allocation7 [shape = 'u8[12288]{0}', space=vmem, size = 0x3000, scoped, tag = 'output window, operand 0, single buffered']
    %7 = vsyncpa [#allocation3], 0
    %8 = vsyncpa [#allocation6], 0
    %9 = vsyncpa [#allocation4], 0
    // Predicated region
    $region2: #{tpu_custom_call.1} parent=1 // pred_check
      _
    $region3: #{tpu_custom_call.1} parent=1 // pred_check_branch
      %11 = sbr.rel (0) target = $region5
    $region4: #{tpu_custom_call.1} parent=1 // pred_region
      %s13 = ssub.s32 128, 128
      %14 = vsyncadd [#allocation3], %s13
      %s16 = sshll.u32 [#allocation2], 4
      %s17 = int_to_ptr.vmem [resolvable:$true] %s16
      %19 = dma.hbm_to_vmem [thread:$0]  %s0, 128, %s17, [#allocation3]
    $region5: #{tpu_custom_call.1} parent=1 // pred_fallthru
      _
    // Predicated region
    $region6: #{tpu_custom_call.1} parent=1 // pred_check
      _
    $region7: #{tpu_custom_call.1} parent=1 // pred_check_branch
      %21 = sbr.rel (0) target = $region9
    $region8: #{tpu_custom_call.1} parent=1 // pred_region
      %s23 = ssub.s32 6144, 6144
      %24 = vsyncadd [#allocation6], %s23
      %s25 = sshll.u32 [#allocation5], 4
      %s26 = int_to_ptr.vmem [resolvable:$true] %s25
      %31 = dma.hbm_to_vmem [thread:$0]  %s1, 6144, %s26, [#allocation6], 384, 384, 24
    $region9: #{tpu_custom_call.1} parent=1 // pred_fallthru
      _
    // Predicated region
    $region10: #{tpu_custom_call.1} parent=1 // pred_check
      _
    $region11: #{tpu_custom_call.1} parent=1 // pred_check_branch
      %33 = sbr.rel (0) target = $region13
    $region12: #{tpu_custom_call.1} parent=1 // pred_region
      %34 = dma.done [#allocation3], 128
    $region13: #{tpu_custom_call.1} parent=1 // pred_fallthru
      _
    // Predicated region
    $region14: #{tpu_custom_call.1} parent=1 // pred_check
      _
    $region15: #{tpu_custom_call.1} parent=1 // pred_check_branch
      %36 = sbr.rel (0) target = $region17
    $region16: #{tpu_custom_call.1} parent=1 // pred_region
      %37 = dma.done [#allocation6], 6144
    $region17: #{tpu_custom_call.1} parent=1 // pred_fallthru
      _
    %v38 = vld [vmem:[#allocation2] sm:$0xff]
    %v39 = vld [vmem:[#allocation5] sm:$0xff]
    %v40 = vld [vmem:[#allocation5 + $0x8] sm:$0xff]
    %v41 = vld [vmem:[#allocation5 + $0x10] sm:$0xff]
    %v42 = vld [vmem:[#allocation5 + $0x18] sm:$0xff]
    %v43 = vld [vmem:[#allocation5 + $0x20] sm:$0xff]
    %v44 = vld [vmem:[#allocation5 + $0x28] sm:$0xff]
    %v45 = vld [vmem:[#allocation5 + $0x30] sm:$0xff]
    %v46 = vld [vmem:[#allocation5 + $0x38] sm:$0xff]
    %v47 = vld [vmem:[#allocation5 + $0x40] sm:$0xff]
    %v48 = vld [vmem:[#allocation5 + $0x48] sm:$0xff]
    %v49 = vld [vmem:[#allocation5 + $0x50] sm:$0xff]
    %v50 = vld [vmem:[#allocation5 + $0x58] sm:$0xff]
    %v51 = vld [vmem:[#allocation5 + $0x60] sm:$0xff]
    %v52 = vld [vmem:[#allocation5 + $0x68] sm:$0xff]
    %v53 = vld [vmem:[#allocation5 + $0x70] sm:$0xff]
    %v54 = vld [vmem:[#allocation5 + $0x78] sm:$0xff]
    %v55 = vld [vmem:[#allocation5 + $0x80] sm:$0xff]
    %v56 = vld [vmem:[#allocation5 + $0x88] sm:$0xff]
    %v57 = vld [vmem:[#allocation5 + $0x90] sm:$0xff]
    %v58 = vld [vmem:[#allocation5 + $0x98] sm:$0xff]
    %v59 = vld [vmem:[#allocation5 + $0xa0] sm:$0xff]
    %v60 = vld [vmem:[#allocation5 + $0xa8] sm:$0xff]
    %v61 = vld [vmem:[#allocation5 + $0xb0] sm:$0xff]
    %v62 = vld [vmem:[#allocation5 + $0xb8] sm:$0xff]
    %v63 = vld [vmem:[#allocation5 + $0xc0] sm:$0xff]
    %v64 = vld [vmem:[#allocation5 + $0xc8] sm:$0xff]
    %v65 = vld [vmem:[#allocation5 + $0xd0] sm:$0xff]
    %v66 = vld [vmem:[#allocation5 + $0xd8] sm:$0xff]
    %v67 = vld [vmem:[#allocation5 + $0xe0] sm:$0xff]
    %v68 = vld [vmem:[#allocation5 + $0xe8] sm:$0xff]
    %v69 = vld [vmem:[#allocation5 + $0xf0] sm:$0xff]
    %v70 = vld [vmem:[#allocation5 + $0xf8] sm:$0xff]
    %v71 = vld [vmem:[#allocation5 + $0x100] sm:$0xff]
    %v72 = vld [vmem:[#allocation5 + $0x108] sm:$0xff]
    %v73 = vld [vmem:[#allocation5 + $0x110] sm:$0xff]
    %v74 = vld [vmem:[#allocation5 + $0x118] sm:$0xff]
    %v75 = vld [vmem:[#allocation5 + $0x120] sm:$0xff]
    %v76 = vld [vmem:[#allocation5 + $0x128] sm:$0xff]
    %v77 = vld [vmem:[#allocation5 + $0x130] sm:$0xff]
    %v78 = vld [vmem:[#allocation5 + $0x138] sm:$0xff]
    %v79 = vld [vmem:[#allocation5 + $0x140] sm:$0xff]
    %v80 = vld [vmem:[#allocation5 + $0x148] sm:$0xff]
    %v81 = vld [vmem:[#allocation5 + $0x150] sm:$0xff]
    %v82 = vld [vmem:[#allocation5 + $0x158] sm:$0xff]
    %v83 = vld [vmem:[#allocation5 + $0x160] sm:$0xff]
    %v84 = vld [vmem:[#allocation5 + $0x168] sm:$0xff]
    %v85 = vld [vmem:[#allocation5 + $0x170] sm:$0xff]
    %v86 = vld [vmem:[#allocation5 + $0x178] sm:$0xff]
    %87 = vmatprep.subr.mxu0 %v40
    %88 = vmatpush1.msra.mxu0 %v39
    %89 = vmatprep.subr.mxu0 %v43
    %90 = vmatpush1.msra.mxu0 %v42
    %91 = vmatprep.subr.mxu0 %v46
    %92 = vmatpush1.msra.mxu0 %v45
    %93 = vmatprep.subr.mxu0 %v49
    %94 = vmatpush1.msra.mxu0 %v48
    %95 = vmatprep.subr.mxu0 %v52
    %96 = vmatpush1.msra.mxu0 %v51
    %97 = vmatprep.subr.mxu0 %v55
    %98 = vmatpush1.msra.mxu0 %v54
    %99 = vmatprep.subr.mxu0 %v58
    %100 = vmatpush1.msra.mxu0 %v57
    %101 = vmatprep.subr.mxu0 %v61
    %102 = vmatpush1.msra.mxu0 %v60
    %103 = vmatprep.subr.mxu0 %v64
    %104 = vmatpush1.msra.mxu0 %v63
    %105 = vmatprep.subr.mxu0 %v67
    %106 = vmatpush1.msra.mxu0 %v66
    %107 = vmatprep.subr.mxu0 %v70
    %108 = vmatpush1.msra.mxu0 %v69
    %109 = vmatprep.subr.mxu0 %v73
    %110 = vmatpush1.msra.mxu0 %v72
    %111 = vmatprep.subr.mxu0 %v76
    %112 = vmatpush1.msra.mxu0 %v75
    %113 = vmatprep.subr.mxu0 %v79
    %114 = vmatpush1.msra.mxu0 %v78
    %115 = vmatprep.subr.mxu0 %v82
    %116 = vmatpush1.msra.mxu0 %v81
    %117 = vmatprep.subr.mxu0 %v85
    %118 = vmatpush1.msra.mxu0 %v84
    %119 = vmatprep.subr.mxu0 0.0
    %120 = vmatpush1.msra.mxu0 0.0
    %121 = vmatprep.subr.mxu0 0.0
    %122 = vmatpush1.msra.mxu0 0.0
    %123 = vmatprep.subr.mxu0 0.0
    %124 = vmatpush1.msra.mxu0 0.0
    %125 = vmatprep.subr.mxu0 0.0
    %126 = vmatpush1.msra.mxu0 0.0
    %127 = vmatprep.subr.mxu0 0.0
    %128 = vmatpush1.msra.mxu0 0.0
    %129 = vmatprep.subr.mxu0 0.0
    %130 = vmatpush1.msra.mxu0 0.0
    %131 = vmatprep.subr.mxu0 0.0
    %132 = vmatpush1.msra.mxu0 0.0
    %133 = vmatprep.subr.mxu0 0.0
    %134 = vmatpush1.msra.mxu0 0.0
    %135 = vmatprep.subr.mxu0 0.0
    %136 = vmatpush1.msra.mxu0 0.0
    %137 = vmatprep.subr.mxu0 0.0
    %138 = vmatpush1.msra.mxu0 0.0
    %139 = vmatprep.subr.mxu0 0.0
    %140 = vmatpush1.msra.mxu0 0.0
    %141 = vmatprep.subr.mxu0 0.0
    %142 = vmatpush1.msra.mxu0 0.0
    %143 = vmatprep.subr.mxu0 0.0
    %144 = vmatpush1.msra.mxu0 0.0
    %145 = vmatprep.subr.mxu0 0.0
    %146 = vmatpush1.msra.mxu0 0.0
    %147 = vmatprep.subr.mxu0 0.0
    %148 = vmatpush1.msra.mxu0 0.0
    %149 = vmatprep.subr.mxu0 0.0
    %150 = vmatpush1.msra.mxu0 0.0
    %151 = vmatprep.mubr.f32.mxu0 0.0
    %152 = vmatmul.mubr.f32.gmra.mrb[0].mxu0 %v38
    %v153 = vpop.f32.mrb[0].mxu0
    %v154 = vadd.f32 0.0, %v153
    %v155 = vpop.f32.mrb[0].mxu0
    %v156 = vadd.f32 0.0, %v155
    %157 = vdwg.mxu0
    %158 = vmatprep.subr.mxu0 0.0
    %159 = vmatpush1.msra.mxu0 %v41
    %160 = vmatprep.subr.mxu0 0.0
    %161 = vmatpush1.msra.mxu0 %v44
    %162 = vmatprep.subr.mxu0 0.0
    %163 = vmatpush1.msra.mxu0 %v47
    %164 = vmatprep.subr.mxu0 0.0
    %165 = vmatpush1.msra.mxu0 %v50
    %166 = vmatprep.subr.mxu0 0.0
    %167 = vmatpush1.msra.mxu0 %v53
    %168 = vmatprep.subr.mxu0 0.0
    %169 = vmatpush1.msra.mxu0 %v56
    %170 = vmatprep.subr.mxu0 0.0
    %171 = vmatpush1.msra.mxu0 %v59
    %172 = vmatprep.subr.mxu0 0.0
    %173 = vmatpush1.msra.mxu0 %v62
    %174 = vmatprep.subr.mxu0 0.0
    %175 = vmatpush1.msra.mxu0 %v65
    %176 = vmatprep.subr.mxu0 0.0
    %177 = vmatpush1.msra.mxu0 %v68
    %178 = vmatprep.subr.mxu0 0.0
    %179 = vmatpush1.msra.mxu0 %v71
    %180 = vmatprep.subr.mxu0 0.0
    %181 = vmatpush1.msra.mxu0 %v74
    %182 = vmatprep.subr.mxu0 0.0
    %183 = vmatpush1.msra.mxu0 %v77
    %184 = vmatprep.subr.mxu0 0.0
    %185 = vmatpush1.msra.mxu0 %v80
    %186 = vmatprep.subr.mxu0 0.0
    %187 = vmatpush1.msra.mxu0 %v83
    %188 = vmatprep.subr.mxu0 0.0
    %189 = vmatpush1.msra.mxu0 %v86
    %190 = vmatprep.subr.mxu0 0.0
    %191 = vmatpush1.msra.mxu0 0.0
    %192 = vmatprep.subr.mxu0 0.0
    %193 = vmatpush1.msra.mxu0 0.0
    %194 = vmatprep.subr.mxu0 0.0
    %195 = vmatpush1.msra.mxu0 0.0
    %196 = vmatprep.subr.mxu0 0.0
    %197 = vmatpush1.msra.mxu0 0.0
    %198 = vmatprep.subr.mxu0 0.0
    %199 = vmatpush1.msra.mxu0 0.0
    %200 = vmatprep.subr.mxu0 0.0
    %201 = vmatpush1.msra.mxu0 0.0
    %202 = vmatprep.subr.mxu0 0.0
    %203 = vmatpush1.msra.mxu0 0.0
    %204 = vmatprep.subr.mxu0 0.0
    %205 = vmatpush1.msra.mxu0 0.0
    %206 = vmatprep.subr.mxu0 0.0
    %207 = vmatpush1.msra.mxu0 0.0
    %208 = vmatprep.subr.mxu0 0.0
    %209 = vmatpush1.msra.mxu0 0.0
    %210 = vmatprep.subr.mxu0 0.0
    %211 = vmatpush1.msra.mxu0 0.0
    %212 = vmatprep.subr.mxu0 0.0
    %213 = vmatpush1.msra.mxu0 0.0
    %214 = vmatprep.subr.mxu0 0.0
    %215 = vmatpush1.msra.mxu0 0.0
    %216 = vmatprep.subr.mxu0 0.0
    %217 = vmatpush1.msra.mxu0 0.0
    %218 = vmatprep.subr.mxu0 0.0
    %219 = vmatpush1.msra.mxu0 0.0
    %220 = vmatprep.subr.mxu0 0.0
    %221 = vmatpush1.msra.mxu0 0.0
    %222 = vmatprep.mubr.f32.mxu0 0.0
    %223 = vmatmul.mubr.f32.gmra.mrb[0].mxu0 %v38
    %v224 = vpop.f32.mrb[0].mxu0
    %v225 = vadd.f32 0.0, %v224
    %v226 = vpop.f32.mrb[0].mxu0
    %227 = vdwg.mxu0
    %228 = vst [vmem:[#allocation7] sm:$0xff] %v154
    %229 = vst [vmem:[#allocation7 + $0x8] sm:$0xff] %v156
    %230 = vst [vmem:[#allocation7 + $0x10] sm:$0xff] %v225
    // Predicated region
    $region18: #{tpu_custom_call.1} parent=1 // pred_check
      _
    $region19: #{tpu_custom_call.1} parent=1 // pred_check_branch
      %232 = sbr.rel (0) target = $region21
    $region20: #{tpu_custom_call.1} parent=1 // pred_region
      %s234 = ssub.s32 384, 384
      %235 = vsyncadd [#allocation4], %s234
      %s237 = sshll.u32 [#allocation7], 4
      %s238 = int_to_ptr.vmem [resolvable:$true] %s237
      %240 = dma.vmem_to_hbm [thread:$0]  %s238, 384, %s2, [#allocation4]
    $region21: #{tpu_custom_call.1} parent=1 // pred_fallthru
      _
    // Predicated region
    $region22: #{tpu_custom_call.1} parent=1 // pred_check
      _
    $region23: #{tpu_custom_call.1} parent=1 // pred_check_branch
      %242 = sbr.rel (0) target = $region25
    $region24: #{tpu_custom_call.1} parent=1 // pred_region
      %243 = dma.done [#allocation4], 384
    $region25: #{tpu_custom_call.1} parent=1 // pred_fallthru
      _
    %244 = vsyncpa [#allocation3], 1
    %245 = vsyncpa [#allocation6], 1
    %246 = vsyncpa [#allocation4], 1

</llo_original>
